<compile_context>
chip_gen: v5e
topology: v5e:2x2
jax: 0.10.0
libtpu: 0.0.40
codegen_flags: <defaults>
</compile_context>

<pallas_src>
import functools

import jax
import jax.numpy as jnp
from jax import lax
from jax.experimental import pallas as pl
from jax.experimental.pallas import tpu as pltpu

LANES = 128
SUBLANES = 8
BLOCK_BYTES = 2 * 1024 * 1024   # streamed bytes per input block per grid step
ROWS_CAP = 8192                 # caps the per-step f32 working set (~4 MiB)


def _dice_kernel(x_ref, t_ref, part_ref, inter_acc, sum_acc, *,
                 rows, block_rows, steps_per_slice):
    s = pl.program_id(1)

    @pl.when(s == 0)
    def _init():
        inter_acc[...] = jnp.zeros_like(inter_acc)
        sum_acc[...] = jnp.zeros_like(sum_acc)

    # Global block index handled by this step and its number of valid rows.
    blk = pl.program_id(0) * steps_per_slice + s
    valid_rows = jnp.clip(rows - blk * block_rows, 0, block_rows)

    x = x_ref[...].astype(jnp.float32)
    t = t_ref[...].astype(jnp.float32)

    def accumulate(xv, tv):
        # Pure-VALU in-block partial reduce into vreg-sized accumulators; no
        # cross-lane (XLU) work until the wrapper combine.
        xr = xv.reshape(block_rows // SUBLANES, SUBLANES, LANES)
        tr = tv.reshape(block_rows // SUBLANES, SUBLANES, LANES)
        inter_acc[...] += (xr * tr).sum(axis=0)   # running sum(x * t)
        sum_acc[...] += (xr + tr).sum(axis=0)     # running sum(x) + sum(t)

    @pl.when(valid_rows == block_rows)   # steady state: no mask arithmetic
    def _fast():
        accumulate(x, t)

    @pl.when(valid_rows < block_rows)    # boundary / grid-overhang block only
    def _masked():
        row = lax.broadcasted_iota(jnp.int32, (block_rows, LANES), 0)
        keep = row < valid_rows
        accumulate(jnp.where(keep, x, 0.0), jnp.where(keep, t, 0.0))

    @pl.when(s == steps_per_slice - 1)
    def _finish():
        # Lane-dense (unmasked vst) partials; dice formula done in the wrapper.
        part_ref[0, :, :] = inter_acc[...]
        part_ref[1, :, :] = sum_acc[...]


def dice_loss(inputs, targets, smooth=1.0, alpha=0.3):
    # alpha is unused in the PyTorch forward; kept for signature parity.
    del alpha
    x = jnp.reshape(inputs, (-1,))
    t = jnp.reshape(targets, (-1,))
    assert x.size == t.size, "inputs and targets must have the same #elements"
    n = x.size

    # Bool blocks are awkward on TPU; promote (rare path).  All other dtypes
    # are streamed as-is and cast inside the kernel.
    if x.dtype == jnp.bool_:
        x = x.astype(jnp.float32)
    if t.dtype == jnp.bool_:
        t = t.astype(jnp.float32)

    # Pad (zeros) to a multiple of one f32 vreg (8*128) so the 1-D -> 2-D
    # reshape is a free dim split and rows is a multiple of 8 for the in-block
    # partial reduce.  Zeros contribute nothing to any of the sums.
    vreg = SUBLANES * LANES
    n_pad = pl.cdiv(n, vreg) * vreg
    if n_pad != n:
        x = jnp.pad(x, (0, n_pad - n))
        t = jnp.pad(t, (0, n_pad - n))
    rows = n_pad // LANES
    x2 = x.reshape(rows, LANES)
    t2 = t.reshape(rows, LANES)

    # ~2 MiB streamed per input block; narrower dtypes get proportionally
    # taller tiles, capped so the in-kernel f32 working set stays bounded.
    itemsize = max(x2.dtype.itemsize, t2.dtype.itemsize)
    tr_max = min(BLOCK_BYTES // (LANES * itemsize), ROWS_CAP)
    tr_max = max(32, (tr_max // 32) * 32)   # legal sublane tiling, all dtypes

    if rows <= tr_max:
        block_rows = rows          # single full-extent block
        total_blocks = 1
    else:
        block_rows = tr_max
        total_blocks = pl.cdiv(rows, tr_max)

    # Leading "parallel" axis: two row-range slices (one per v7x TensorCore);
    # single-core chips simply iterate it sequentially.
    num_slices = 2 if total_blocks >= 2 else 1
    steps_per_slice = pl.cdiv(total_blocks, num_slices)

    def in_map(c, s):
        # Clamp so a fully out-of-range step (odd block count) re-reads the
        # last valid block; the kernel masks it to zero (valid_rows == 0).
        return (jnp.minimum(c * steps_per_slice + s, total_blocks - 1), 0)

    kernel = functools.partial(
        _dice_kernel,
        rows=int(rows),
        block_rows=int(block_rows),
        steps_per_slice=int(steps_per_slice),
    )

    partials = pl.pallas_call(
        kernel,
        out_shape=jax.ShapeDtypeStruct((num_slices * 2, SUBLANES, LANES),
                                       jnp.float32),
        grid_spec=pltpu.PrefetchScalarGridSpec(
            num_scalar_prefetch=0,
            grid=(num_slices, steps_per_slice),
            in_specs=[
                pl.BlockSpec((block_rows, LANES), in_map),
                pl.BlockSpec((block_rows, LANES), in_map),
            ],
            out_specs=pl.BlockSpec((2, SUBLANES, LANES),
                                   lambda c, s: (c, 0, 0)),
            scratch_shapes=[
                pltpu.VMEM((SUBLANES, LANES), jnp.float32),  # sum(x*t)
                pltpu.VMEM((SUBLANES, LANES), jnp.float32),  # sum(x)+sum(t)
            ],
        ),
        compiler_params=pltpu.CompilerParams(
            dimension_semantics=("parallel", "arbitrary"),
            vmem_limit_bytes=32 * 1024 * 1024,
        ),
    )(x2, t2)

    # Tiny wrapper-side combine: 2-way (per-core) + cross-lane reduction and
    # the scalar dice formula.
    p = partials.reshape(num_slices, 2, SUBLANES, LANES)
    inter = jnp.sum(p[:, 0])
    denom = jnp.sum(p[:, 1])
    dice = (2.0 * inter + smooth) / (denom + smooth)
    return jnp.abs(1.0 - dice)


def dice_loss_ref(inputs, targets, smooth=1.0):
    x = jnp.reshape(inputs, (-1,)).astype(jnp.float32)
    t = jnp.reshape(targets, (-1,)).astype(jnp.float32)
    inter = jnp.sum(x * t)
    dice = (2.0 * inter + smooth) / (jnp.sum(x) + jnp.sum(t) + smooth)
    return jnp.abs(1.0 - dice)


if __name__ == "__main__":
    key = jax.random.PRNGKey(0)
    k1, k2, k3, k4, k5, k6 = jax.random.split(key, 6)

    # Small segmentation-like case: (batch, channels, H, W) probabilities/masks.
    inputs = jax.nn.sigmoid(jax.random.normal(k1, (2, 4, 16, 16), jnp.float32))
    targets = (jax.random.uniform(k2, (2, 4, 16, 16)) > 0.5).astype(jnp.float32)
    out = jax.block_until_ready(dice_loss(inputs, targets, smooth=1.0))
    ref = dice_loss_ref(inputs, targets, smooth=1.0)
    assert jnp.allclose(out, ref, rtol=1e-5, atol=1e-5), (out, ref)

    # Non-vreg-divisible element count: exercises the zero pad + single-block path.
    inputs2 = jax.nn.sigmoid(jax.random.normal(k3, (1, 4, 300, 300), jnp.float32))
    targets2 = (jax.random.uniform(k4, (1, 4, 300, 300)) > 0.5).astype(jnp.float32)
    out2 = jax.block_until_ready(dice_loss(inputs2, targets2, smooth=1.0))
    ref2 = dice_loss_ref(inputs2, targets2, smooth=1.0)
    assert jnp.allclose(out2, ref2, rtol=1e-5, atol=1e-5), (out2, ref2)

    # Larger case: multi-block grid with an odd block count -> exercises the
    # two-slice "parallel" axis, the partial-block row mask, and the clamped
    # fully-out-of-range step on the second slice.
    inputs3 = jax.nn.sigmoid(jax.random.normal(k5, (2, 5, 1000, 128), jnp.float32))
    targets3 = (jax.random.uniform(k6, (2, 5, 1000, 128)) > 0.5).astype(jnp.float32)
    out3 = jax.block_until_ready(dice_loss(inputs3, targets3, smooth=1.0))
    ref3 = dice_loss_ref(inputs3, targets3, smooth=1.0)
    assert jnp.allclose(out3, ref3, rtol=1e-5, atol=1e-5), (out3, ref3)

    print("KERNEL_OK")
</pallas_src>

<mosaic_0001>
module attributes {stable_mosaic.version = 11 : i64} {
  func.func @_dice_kernel(%arg0: i32, %arg1: i32, %arg2: memref<16x128xf32, #tpu.memory_space<vmem>>, %arg3: memref<16x128xf32, #tpu.memory_space<vmem>>, %arg4: memref<2x8x128xf32, #tpu.memory_space<vmem>>, %arg5: memref<8x128xf32, #tpu.memory_space<vmem>>, %arg6: memref<8x128xf32, #tpu.memory_space<vmem>>) attributes {dimension_semantics = [#tpu.dimension_semantics<parallel>, #tpu.dimension_semantics<arbitrary>], iteration_bounds = array<i64: 1, 1>, scalar_prefetch = 0 : i64, scratch_operands = 2 : i64, tpu.core_type = #tpu.core_type<tc>, window_params = [{transform_indices = @transform_0, window_bounds = array<i64: 16, 128>}, {transform_indices = @transform_1, window_bounds = array<i64: 16, 128>}, {transform_indices = @transform_2, window_bounds = array<i64: 2, 8, 128>}]} {
    %c0_i32 = arith.constant 0 : i32
    %0 = arith.cmpi eq, %arg1, %c0_i32 : i32
    %1 = arith.extui %0 : i1 to i32
    %c0_i32_0 = arith.constant 0 : i32
    %2 = arith.cmpi ne, %1, %c0_i32_0 : i32
    scf.if %2 {
      %cst = arith.constant 0.000000e+00 : f32
      %20 = vector.broadcast %cst : f32 to vector<8x128xf32>
      %c0_13 = arith.constant 0 : index
      %c0_14 = arith.constant 0 : index
      %21 = vector.load %arg5[%c0_13, %c0_14] : memref<8x128xf32, #tpu.memory_space<vmem>>, vector<8x128xf32>
      tpu.vector_store %arg5[%c0_13, %c0_14], %20 {strides = array<i32>} : memref<8x128xf32, #tpu.memory_space<vmem>>, vector<8x128xf32>,
      %cst_15 = arith.constant 0.000000e+00 : f32
      %22 = vector.broadcast %cst_15 : f32 to vector<8x128xf32>
      %c0_16 = arith.constant 0 : index
      %c0_17 = arith.constant 0 : index
      %23 = vector.load %arg6[%c0_16, %c0_17] : memref<8x128xf32, #tpu.memory_space<vmem>>, vector<8x128xf32>
      tpu.vector_store %arg6[%c0_16, %c0_17], %22 {strides = array<i32>} : memref<8x128xf32, #tpu.memory_space<vmem>>, vector<8x128xf32>,
    } else {
    }
    %c1_i32 = arith.constant 1 : i32
    %3 = arith.muli %arg0, %c1_i32 : i32
    %4 = arith.addi %3, %arg1 : i32
    %c16_i32 = arith.constant 16 : i32
    %5 = arith.muli %4, %c16_i32 : i32
    %c16_i32_1 = arith.constant 16 : i32
    %6 = arith.subi %c16_i32_1, %5 : i32
    %c0_i32_2 = arith.constant 0 : i32
    %c16_i32_3 = arith.constant 16 : i32
    %7 = arith.maxsi %c0_i32_2, %6 : i32
    %8 = arith.minsi %c16_i32_3, %7 : i32
    %c0 = arith.constant 0 : index
    %c0_4 = arith.constant 0 : index
    %9 = vector.load %arg2[%c0, %c0_4] : memref<16x128xf32, #tpu.memory_space<vmem>>, vector<16x128xf32>
    %c0_5 = arith.constant 0 : index
    %c0_6 = arith.constant 0 : index
    %10 = vector.load %arg3[%c0_5, %c0_6] : memref<16x128xf32, #tpu.memory_space<vmem>>, vector<16x128xf32>
    %c16_i32_7 = arith.constant 16 : i32
    %11 = arith.cmpi eq, %8, %c16_i32_7 : i32
    %12 = arith.extui %11 : i1 to i32
    %c0_i32_8 = arith.constant 0 : i32
    %13 = arith.cmpi ne, %12, %c0_i32_8 : i32
    scf.if %13 {
      %20 = vector.shape_cast %9 : vector<16x128xf32> to vector<2x8x128xf32>
      %21 = vector.shape_cast %10 : vector<16x128xf32> to vector<2x8x128xf32>
      %c0_13 = arith.constant 0 : index
      %c0_14 = arith.constant 0 : index
      %22 = vector.load %arg5[%c0_13, %c0_14] : memref<8x128xf32, #tpu.memory_space<vmem>>, vector<8x128xf32>
      %23 = arith.mulf %20, %21 : vector<2x8x128xf32>
      %cst = arith.constant dense<0.000000e+00> : vector<8x128xf32>
      %24 = vector.multi_reduction <add>, %23, %cst [0] : vector<2x8x128xf32> to vector<8x128xf32>
      %25 = arith.addf %22, %24 : vector<8x128xf32>
      %c0_15 = arith.constant 0 : index
      %c0_16 = arith.constant 0 : index
      %26 = vector.load %arg5[%c0_15, %c0_16] : memref<8x128xf32, #tpu.memory_space<vmem>>, vector<8x128xf32>
      tpu.vector_store %arg5[%c0_15, %c0_16], %25 {strides = array<i32>} : memref<8x128xf32, #tpu.memory_space<vmem>>, vector<8x128xf32>,
      %c0_17 = arith.constant 0 : index
      %c0_18 = arith.constant 0 : index
      %27 = vector.load %arg6[%c0_17, %c0_18] : memref<8x128xf32, #tpu.memory_space<vmem>>, vector<8x128xf32>
      %28 = arith.addf %20, %21 : vector<2x8x128xf32>
      %cst_19 = arith.constant dense<0.000000e+00> : vector<8x128xf32>
      %29 = vector.multi_reduction <add>, %28, %cst_19 [0] : vector<2x8x128xf32> to vector<8x128xf32>
      %30 = arith.addf %27, %29 : vector<8x128xf32>
      %c0_20 = arith.constant 0 : index
      %c0_21 = arith.constant 0 : index
      %31 = vector.load %arg6[%c0_20, %c0_21] : memref<8x128xf32, #tpu.memory_space<vmem>>, vector<8x128xf32>
      tpu.vector_store %arg6[%c0_20, %c0_21], %30 {strides = array<i32>} : memref<8x128xf32, #tpu.memory_space<vmem>>, vector<8x128xf32>,
    } else {
    }
    %c16_i32_9 = arith.constant 16 : i32
    %14 = arith.cmpi slt, %8, %c16_i32_9 : i32
    %15 = arith.extui %14 : i1 to i32
    %c0_i32_10 = arith.constant 0 : i32
    %16 = arith.cmpi ne, %15, %c0_i32_10 : i32
    scf.if %16 {
      %20 = tpu.iota {dimensions = array<i32: 0>} : vector<16x128xi32>
      %21 = vector.broadcast %8 : i32 to vector<16x128xi32>
      %22 = arith.cmpi slt, %20, %21 : vector<16x128xi32>
      %cst = arith.constant 0.000000e+00 : f32
      %23 = vector.broadcast %cst : f32 to vector<16x128xf32>
      %24 = arith.select %22, %9, %23 : vector<16x128xi1>, vector<16x128xf32>
      %cst_13 = arith.constant 0.000000e+00 : f32
      %25 = vector.broadcast %cst_13 : f32 to vector<16x128xf32>
      %26 = arith.select %22, %10, %25 : vector<16x128xi1>, vector<16x128xf32>
      %27 = vector.shape_cast %24 : vector<16x128xf32> to vector<2x8x128xf32>
      %28 = vector.shape_cast %26 : vector<16x128xf32> to vector<2x8x128xf32>
      %c0_14 = arith.constant 0 : index
      %c0_15 = arith.constant 0 : index
      %29 = vector.load %arg5[%c0_14, %c0_15] : memref<8x128xf32, #tpu.memory_space<vmem>>, vector<8x128xf32>
      %30 = arith.mulf %27, %28 : vector<2x8x128xf32>
      %cst_16 = arith.constant dense<0.000000e+00> : vector<8x128xf32>
      %31 = vector.multi_reduction <add>, %30, %cst_16 [0] : vector<2x8x128xf32> to vector<8x128xf32>
      %32 = arith.addf %29, %31 : vector<8x128xf32>
      %c0_17 = arith.constant 0 : index
      %c0_18 = arith.constant 0 : index
      %33 = vector.load %arg5[%c0_17, %c0_18] : memref<8x128xf32, #tpu.memory_space<vmem>>, vector<8x128xf32>
      tpu.vector_store %arg5[%c0_17, %c0_18], %32 {strides = array<i32>} : memref<8x128xf32, #tpu.memory_space<vmem>>, vector<8x128xf32>,
      %c0_19 = arith.constant 0 : index
      %c0_20 = arith.constant 0 : index
      %34 = vector.load %arg6[%c0_19, %c0_20] : memref<8x128xf32, #tpu.memory_space<vmem>>, vector<8x128xf32>
      %35 = arith.addf %27, %28 : vector<2x8x128xf32>
      %cst_21 = arith.constant dense<0.000000e+00> : vector<8x128xf32>
      %36 = vector.multi_reduction <add>, %35, %cst_21 [0] : vector<2x8x128xf32> to vector<8x128xf32>
      %37 = arith.addf %34, %36 : vector<8x128xf32>
      %c0_22 = arith.constant 0 : index
      %c0_23 = arith.constant 0 : index
      %38 = vector.load %arg6[%c0_22, %c0_23] : memref<8x128xf32, #tpu.memory_space<vmem>>, vector<8x128xf32>
      tpu.vector_store %arg6[%c0_22, %c0_23], %37 {strides = array<i32>} : memref<8x128xf32, #tpu.memory_space<vmem>>, vector<8x128xf32>,
    } else {
    }
    %c0_i32_11 = arith.constant 0 : i32
    %17 = arith.cmpi eq, %arg1, %c0_i32_11 : i32
    %18 = arith.extui %17 : i1 to i32
    %c0_i32_12 = arith.constant 0 : i32
    %19 = arith.cmpi ne, %18, %c0_i32_12 : i32
    scf.if %19 {
      %c0_13 = arith.constant 0 : index
      %c0_14 = arith.constant 0 : index
      %20 = vector.load %arg5[%c0_13, %c0_14] : memref<8x128xf32, #tpu.memory_space<vmem>>, vector<8x128xf32>
      %c0_15 = arith.constant 0 : index
      %c0_16 = arith.constant 0 : index
      %c0_17 = arith.constant 0 : index
      %21 = vector.load %arg4[%c0_15, %c0_16, %c0_17] : memref<2x8x128xf32, #tpu.memory_space<vmem>>, vector<1x8x128xf32>
      %22 = vector.shape_cast %21 : vector<1x8x128xf32> to vector<8x128xf32>
      %23 = vector.shape_cast %20 : vector<8x128xf32> to vector<1x8x128xf32>
      tpu.vector_store %arg4[%c0_15, %c0_16, %c0_17], %23 {strides = array<i32>} : memref<2x8x128xf32, #tpu.memory_space<vmem>>, vector<1x8x128xf32>,
      %c0_18 = arith.constant 0 : index
      %c0_19 = arith.constant 0 : index
      %24 = vector.load %arg6[%c0_18, %c0_19] : memref<8x128xf32, #tpu.memory_space<vmem>>, vector<8x128xf32>
      %c1 = arith.constant 1 : index
      %c0_20 = arith.constant 0 : index
      %c0_21 = arith.constant 0 : index
      %25 = vector.load %arg4[%c1, %c0_20, %c0_21] : memref<2x8x128xf32, #tpu.memory_space<vmem>>, vector<1x8x128xf32>
      %26 = vector.shape_cast %25 : vector<1x8x128xf32> to vector<8x128xf32>
      %27 = vector.shape_cast %24 : vector<8x128xf32> to vector<1x8x128xf32>
      tpu.vector_store %arg4[%c1, %c0_20, %c0_21], %27 {strides = array<i32>} : memref<2x8x128xf32, #tpu.memory_space<vmem>>, vector<1x8x128xf32>,
    } else {
    }
    return
  }
  func.func @transform_0(%arg0: i32, %arg1: i32) -> (i32, i32) {
    %c1_i32 = arith.constant 1 : i32
    %0 = arith.muli %arg0, %c1_i32 : i32
    %1 = arith.addi %0, %arg1 : i32
    %c0_i32 = arith.constant 0 : i32
    %2 = arith.minsi %1, %c0_i32 : i32
    %c0_i32_0 = arith.constant 0 : i32
    %c0_i32_1 = arith.constant 0 : i32
    return %2, %c0_i32_0 : i32, i32
  }
  func.func @transform_1(%arg0: i32, %arg1: i32) -> (i32, i32) {
    %c1_i32 = arith.constant 1 : i32
    %0 = arith.muli %arg0, %c1_i32 : i32
    %1 = arith.addi %0, %arg1 : i32
    %c0_i32 = arith.constant 0 : i32
    %2 = arith.minsi %1, %c0_i32 : i32
    %c0_i32_0 = arith.constant 0 : i32
    %c0_i32_1 = arith.constant 0 : i32
    return %2, %c0_i32_0 : i32, i32
  }
  func.func @transform_2(%arg0: i32, %arg1: i32) -> (i32, i32, i32) {
    %c0_i32 = arith.constant 0 : i32
    %c0_i32_0 = arith.constant 0 : i32
    %c0_i32_1 = arith.constant 0 : i32
    return %arg0, %c0_i32, %c0_i32_0 : i32, i32, i32
  }
}

</mosaic_0001>

<llo_original>
// kernel: tpu_custom_call.1
$region0: #{tpu_custom_call.1}
  #allocation0 [shape = 'u32[]', space=smem, size = 0x4, offset = 0x4, fixed_abs, tag = 'smem constant byte address 0x4 - core index']
  #allocation1 [shape = 'u32[72,128]{1,0:T(1,128)}', space=vmem, size = 0x9000, scoped, tag = 'internal scratch']
  #allocation2 [shape = 'f32[8,128]{1,0:T(8,128)}', space=vmem, size = 0x1000, scoped, tag = 'scratch operand']
  #allocation3 [shape = 'f32[8,128]{1,0:T(8,128)}', space=vmem, size = 0x1000, scoped, tag = 'scratch operand']
  %s0 = inlined_call_operand.hbm [shape: f32[16,128], index: 0, kind: input, shape index: {}]
  %s1 = inlined_call_operand.hbm [shape: f32[16,128], index: 1, kind: input, shape index: {}]
  %s2 = inlined_call_operand.hbm [shape: f32[2,8,128], index: 2, kind: output, shape index: {}]
  %s3 = sld [smem:[#allocation0]]
  $region42: #{tpu_custom_call.1} parent=0
    _
  %s5 = ssub.s32 1, %s3
  %s6 = scalar_select 0, %s5, %s3
  $region1: #{tpu_custom_call.1} parent=0
    #allocation4 [shape = 'u8[8192]{0}', space=vmem, size = 0x2000, scoped, tag = 'input window, operand 0, single buffered']
    #allocation5 [shape = 's32[1]{0}', space=sflag, size = 0x4, scoped, tag = 'scoped memory for tpu_custom_call.1']
    #allocation6 [shape = 's32[1]{0}', space=sflag, size = 0x4, scoped, tag = 'scoped memory for tpu_custom_call.1']
    #allocation7 [shape = 'u8[8192]{0}', space=vmem, size = 0x2000, scoped, tag = 'input window, operand 1, single buffered']
    #allocation8 [shape = 's32[1]{0}', space=sflag, size = 0x4, scoped, tag = 'scoped memory for tpu_custom_call.1']
    #allocation9 [shape = 'u8[8192]{0}', space=vmem, size = 0x2000, scoped, tag = 'output window, operand 0, single buffered']
    %7 = vsyncpa [#allocation5], 0
    %8 = vsyncpa [#allocation8], 0
    %9 = vsyncpa [#allocation6], 0
    // Predicated region
    $region2: #{tpu_custom_call.1} parent=1 // pred_check
      _
    $region3: #{tpu_custom_call.1} parent=1 // pred_check_branch
      %11 = sbr.rel (0) target = $region5
    $region4: #{tpu_custom_call.1} parent=1 // pred_region
      %s12 = sadd.s32 0, 0
      %p13 = scmp.lt.s32.totalorder %s12, 0
      %s14 = scalar_select %p13, %s12, 0
      %s15 = smul.u32 2, %s14
      %17 = vsyncadd [#allocation5], 0
      %s18 = smul.addr %s15, 8
      %s19 = scalar_lea.hbm %s0, %s18
      %s20 = sshll.u32 %s19, 4
      %s21 = int_to_ptr.hbm [resolvable:$true] %s20
      %s22 = sshll.u32 [#allocation4], 4
      %s23 = int_to_ptr.vmem [resolvable:$true] %s22
      %28 = dma.hbm_to_vmem [thread:$0]  %s21, 256, %s23, [#allocation5], 128, 128, 8
    $region5: #{tpu_custom_call.1} parent=1 // pred_fallthru
      _
    // Predicated region
    $region6: #{tpu_custom_call.1} parent=1 // pred_check
      _
    $region7: #{tpu_custom_call.1} parent=1 // pred_check_branch
      %30 = sbr.rel (0) target = $region9
    $region8: #{tpu_custom_call.1} parent=1 // pred_region
      %s31 = sadd.s32 0, 0
      %p32 = scmp.lt.s32.totalorder %s31, 0
      %s33 = scalar_select %p32, %s31, 0
      %s34 = smul.u32 2, %s33
      %36 = vsyncadd [#allocation8], 0
      %s37 = smul.addr %s34, 8
      %s38 = scalar_lea.hbm %s1, %s37
      %s39 = sshll.u32 %s38, 4
      %s40 = int_to_ptr.hbm [resolvable:$true] %s39
      %s41 = sshll.u32 [#allocation7], 4
      %s42 = int_to_ptr.vmem [resolvable:$true] %s41
      %47 = dma.hbm_to_vmem [thread:$0]  %s40, 256, %s42, [#allocation8], 128, 128, 8
    $region9: #{tpu_custom_call.1} parent=1 // pred_fallthru
      _
    // Predicated region
    $region10: #{tpu_custom_call.1} parent=1 // pred_check
      _
    $region11: #{tpu_custom_call.1} parent=1 // pred_check_branch
      %49 = sbr.rel (0) target = $region13
    $region12: #{tpu_custom_call.1} parent=1 // pred_region
      %51 = dma.done [#allocation5], 256
    $region13: #{tpu_custom_call.1} parent=1 // pred_fallthru
      _
    // Predicated region
    $region14: #{tpu_custom_call.1} parent=1 // pred_check
      _
    $region15: #{tpu_custom_call.1} parent=1 // pred_check_branch
      %53 = sbr.rel (0) target = $region17
    $region16: #{tpu_custom_call.1} parent=1 // pred_region
      %55 = dma.done [#allocation8], 256
    $region17: #{tpu_custom_call.1} parent=1 // pred_fallthru
      _
    %s56 = sadd.s32 0, 0
    %p57 = scmp.lt.s32.totalorder %s56, 0
    %s58 = scalar_select %p57, %s56, 0
    %s59 = smul.u32 2, %s58
    %s60 = sadd.s32 0, 0
    %p61 = scmp.lt.s32.totalorder %s60, 0
    %s62 = scalar_select %p61, %s60, 0
    %s63 = smul.u32 2, %s62
    %p64 = scmp.eq.s32.totalorder 0, 0
    // Predicated region
    $region18: #{tpu_custom_call.1} parent=1 // pred_check
      %p65 = pneg %p64
    $region19: #{tpu_custom_call.1} parent=1 // pred_check_branch
      %67 = sbr.rel (%p65) target = $region21
    $region20: #{tpu_custom_call.1} parent=1 // pred_region
      %68 = vst [vmem:[#allocation2] sm:$0xff] 0.0
      %69 = vst [vmem:[#allocation3] sm:$0xff] 0.0
    $region21: #{tpu_custom_call.1} parent=1 // pred_fallthru
      _
    %s70 = sadd.s32 0, 0
    %s71 = smul.u32 %s70, 16
    %s72 = ssub.s32 16, %s71
    %p73 = scmp.gt.s32.totalorder %s72, 0
    %s74 = scalar_select %p73, %s72, 0
    %p75 = scmp.lt.s32.totalorder %s74, 16
    %s76 = scalar_select %p75, %s74, 16
    %v77 = vld [vmem:[#allocation4] sm:$0xff]
    %v78 = vld [vmem:[#allocation4 + $0x8] sm:$0xff]
    %v79 = vld [vmem:[#allocation7] sm:$0xff]
    %v80 = vld [vmem:[#allocation7 + $0x8] sm:$0xff]
    %p81 = scmp.eq.s32.totalorder %s76, 16
    // Predicated region
    $region22: #{tpu_custom_call.1} parent=1 // pred_check
      %p82 = pneg %p81
    $region23: #{tpu_custom_call.1} parent=1 // pred_check_branch
      %84 = sbr.rel (%p82) target = $region25
    $region24: #{tpu_custom_call.1} parent=1 // pred_region
      %v85 = vld [vmem:[#allocation2] sm:$0xff]
      %v86 = vmul.f32 %v77, %v79
      %v87 = vmul.f32 %v78, %v80
      %v88 = vadd.f32 %v86, %v87
      %v89 = vadd.f32 %v85, %v88
      %90 = vst [vmem:[#allocation2] sm:$0xff] %v89
      %v91 = vld [vmem:[#allocation3] sm:$0xff]
      %v92 = vadd.f32 %v77, %v79
      %v93 = vadd.f32 %v78, %v80
      %v94 = vadd.f32 %v92, %v93
      %v95 = vadd.f32 %v91, %v94
      %96 = vst [vmem:[#allocation3] sm:$0xff] %v95
    $region25: #{tpu_custom_call.1} parent=1 // pred_fallthru
      _
    %p97 = scmp.lt.s32.totalorder %s76, 16
    // Predicated region
    $region26: #{tpu_custom_call.1} parent=1 // pred_check
      %p98 = pneg %p97
    $region27: #{tpu_custom_call.1} parent=1 // pred_check_branch
      %100 = sbr.rel (%p98) target = $region29
    $region28: #{tpu_custom_call.1} parent=1 // pred_region
      %v101 = vlaneseq
      %v102 = vshrl.u32 %v101, 7
      %v103 = vadd.s32 %v102, 8
      %v104 = vstv %s76
      %vm105 = vcmp.lt.s32.totalorder %v102, %v104
      %vm106 = vcmp.lt.s32.totalorder %v103, %v104
      %v107 = vsel %vm105, %v77, 0.0
      %v108 = vsel %vm106, %v78, 0.0
      %v109 = vsel %vm105, %v79, 0.0
      %v110 = vsel %vm106, %v80, 0.0
      %v111 = vld [vmem:[#allocation2] sm:$0xff]
      %v112 = vmul.f32 %v107, %v109
      %v113 = vmul.f32 %v108, %v110
      %v114 = vadd.f32 %v112, %v113
      %v115 = vadd.f32 %v111, %v114
      %116 = vst [vmem:[#allocation2] sm:$0xff] %v115
      %v117 = vld [vmem:[#allocation3] sm:$0xff]
      %v118 = vadd.f32 %v107, %v109
      %v119 = vadd.f32 %v108, %v110
      %v120 = vadd.f32 %v118, %v119
      %v121 = vadd.f32 %v117, %v120
      %122 = vst [vmem:[#allocation3] sm:$0xff] %v121
    $region29: #{tpu_custom_call.1} parent=1 // pred_fallthru
      _
    // Predicated region
    $region30: #{tpu_custom_call.1} parent=1 // pred_check
      %p123 = pneg %p64
    $region31: #{tpu_custom_call.1} parent=1 // pred_check_branch
      %125 = sbr.rel (%p123) target = $region33
    $region32: #{tpu_custom_call.1} parent=1 // pred_region
      %v126 = vld [vmem:[#allocation2] sm:$0xff]
      %127 = vst [vmem:[#allocation9] sm:$0xff] %v126
      %v128 = vld [vmem:[#allocation3] sm:$0xff]
      %s129 = scalar_lea.vmem [#allocation9], 8
      %130 = vst [vmem:[%s129] sm:$0xff] %v128
    $region33: #{tpu_custom_call.1} parent=1 // pred_fallthru
      _
    // Predicated region
    $region34: #{tpu_custom_call.1} parent=1 // pred_check
      _
    $region35: #{tpu_custom_call.1} parent=1 // pred_check_branch
      %132 = sbr.rel (0) target = $region37
    $region36: #{tpu_custom_call.1} parent=1 // pred_region
      %134 = vsyncadd [#allocation6], 0
      %s135 = sshll.u32 [#allocation9], 4
      %s136 = int_to_ptr.vmem [resolvable:$true] %s135
      %s137 = sshll.u32 %s2, 4
      %s138 = int_to_ptr.hbm [resolvable:$true] %s137
      %143 = dma.vmem_to_hbm [thread:$0]  %s136, 256, %s138, [#allocation6], 128, 128, 8
    $region37: #{tpu_custom_call.1} parent=1 // pred_fallthru
      _
    // Predicated region
    $region38: #{tpu_custom_call.1} parent=1 // pred_check
      _
    $region39: #{tpu_custom_call.1} parent=1 // pred_check_branch
      %145 = sbr.rel (0) target = $region41
    $region40: #{tpu_custom_call.1} parent=1 // pred_region
      %147 = dma.done [#allocation6], 256
    $region41: #{tpu_custom_call.1} parent=1 // pred_fallthru
      _
    %148 = vsyncpa [#allocation5], 1
    %149 = vsyncpa [#allocation8], 1
    %150 = vsyncpa [#allocation6], 1

</llo_original>
